<compile_context>
chip_gen: v6e
topology: v6e:2x2x1
jax: 0.10.0
libtpu: 0.0.40
codegen_flags: <defaults>
</compile_context>

<pallas_src>
import jax
import jax.numpy as jnp
from jax.experimental import pallas as pl
from jax.experimental.pallas import tpu as pltpu


def _round_up(x, m):
    return ((x + m - 1) // m) * m


# ---------------------------------------------------------------------------
# Kernel: per-batch (Cout, Cin) @ (Cin, P) + bias + ReLU, tiled & pipelined.
#   grid = (B, Cout/TM, P/TN, Cin/TK); K axis last ("arbitrary") with a VMEM
#   f32 accumulator; bf16 operands feed the MXU.
# ---------------------------------------------------------------------------
def conv1x1_bias_relu_kernel(w_ref, x_ref, b_ref, o_ref, acc_ref):
    # w_ref: (TM, TK) bf16, x_ref: (TK, TN) bf16, b_ref: (TM, 1) f32
    # o_ref: (TM, TN) f32, acc_ref: (TM, TN) f32 scratch
    k = pl.program_id(3)

    @pl.when(k == 0)
    def _init():
        acc_ref[...] = jnp.zeros_like(acc_ref)

    # TODO(synk): if Cin stays tiny (e.g. 4), a VPU broadcast-MAC over channels would
    # beat a K=4 MXU pass; irrelevant once a real ResNet (Cin>=256) is plugged in.
    acc_ref[...] += jnp.dot(w_ref[...], x_ref[...],
                            preferred_element_type=jnp.float32)

    @pl.when(k == pl.num_programs(3) - 1)
    def _finalize():
        o_ref[...] = jnp.maximum(acc_ref[...] + b_ref[...], 0.0).astype(o_ref.dtype)


def conv1x1_bias_relu(wt, x, bias):
    """wt: (Cout, Cin) bf16, x: (B, Cin, P) bf16, bias: (Cout, 1) f32.
    Returns relu(wt @ x[b] + bias) as (B, Cout, P) float32."""
    B, Cin, P = x.shape
    Cout = wt.shape[0]

    # Tile sizes: lane tile a multiple of 128 (MXU/vreg friendly, unmasked stores),
    # K tile up to 512, Cout tile up to 256.  Double-buffered f32/bf16 tiles at these
    # sizes stay well under a few MiB of VMEM (fits the v7x 64 MiB budget with room).
    TN = 256 if P > 256 else 128
    TM = 256 if Cout > 256 else _round_up(Cout, 8)
    TK = 512 if Cin > 512 else Cin

    P_pad = _round_up(P, TN)
    M_pad = _round_up(Cout, TM)
    K_pad = _round_up(Cin, TK)

    if K_pad != Cin or P_pad != P:
        x = jnp.pad(x, ((0, 0), (0, K_pad - Cin), (0, P_pad - P)))
    if M_pad != Cout or K_pad != Cin:
        wt = jnp.pad(wt, ((0, M_pad - Cout), (0, K_pad - Cin)))
    if M_pad != Cout:
        bias = jnp.pad(bias, ((0, M_pad - Cout), (0, 0)))

    nM, nN, nK = M_pad // TM, P_pad // TN, K_pad // TK

    cost = pl.CostEstimate(
        flops=2 * B * Cout * Cin * P,
        transcendentals=0,
        bytes_accessed=int(x.size * 2 + wt.size * 2 + bias.size * 4
                           + B * M_pad * P_pad * 4),
    )

    out = pl.pallas_call(
        conv1x1_bias_relu_kernel,
        out_shape=jax.ShapeDtypeStruct((B, M_pad, P_pad), jnp.float32),
        grid_spec=pltpu.PrefetchScalarGridSpec(
            num_scalar_prefetch=0,
            grid=(B, nM, nN, nK),
            in_specs=[
                pl.BlockSpec((TM, TK), lambda b, i, j, k: (i, k)),          # wt
                pl.BlockSpec((None, TK, TN), lambda b, i, j, k: (b, k, j)),  # x
                pl.BlockSpec((TM, 1), lambda b, i, j, k: (i, 0)),           # bias
            ],
            out_specs=pl.BlockSpec((None, TM, TN), lambda b, i, j, k: (b, i, j)),
            scratch_shapes=[pltpu.VMEM((TM, TN), jnp.float32)],
        ),
        compiler_params=pltpu.CompilerParams(
            dimension_semantics=("parallel", "parallel", "parallel", "arbitrary"),
            vmem_limit_bytes=48 * 1024 * 1024,
        ),
        cost_estimate=cost,
    )(wt, x, bias)
    return out[:, :Cout, :P]


# ---------------------------------------------------------------------------
# BackboneBase forward (return_interm_layers=False -> {'0': layer4 output})
# ---------------------------------------------------------------------------
def backbone_base_forward(tensors, mask, params, stride=4):
    """tensors: (B, Cin, H, W) float32 NCHW; mask: (B, H, W) bool.
    Returns {'0': (features NCHW float32, mask bool at feature resolution)}."""
    B, Cin, H, W = tensors.shape
    Ho, Wo = H // stride, W // stride
    w, b = params["w"], params["b"]          # (Cin, Cout), (1, Cout)
    Cout = w.shape[1]

    # Stride-s spatial sampling of the 1x1 conv; formulated as per-batch
    # (Cout, Cin) @ (Cin, Ho*Wo) so no NCHW<->NHWC transposes are needed and the
    # kernel output is already NCHW.  The strided slice + reshape + bf16 cast fuse
    # into a single XLA copy pass feeding the kernel.
    # TODO(synk): fold the strided sampling into the kernel via pl.ds(..., stride=stride)
    # reads of the full-resolution tensor to remove this remaining HBM pass.
    x_s = tensors[:, :, ::stride, ::stride]                      # (B, Cin, Ho, Wo)
    x_mat = x_s.reshape(B, Cin, Ho * Wo).astype(jnp.bfloat16)    # (B, Cin, P)
    wt = jnp.transpose(w, (1, 0)).astype(jnp.bfloat16)           # (Cout, Cin)
    bias = jnp.transpose(b, (1, 0)).astype(jnp.float32)          # (Cout, 1)

    feat_mat = conv1x1_bias_relu(wt, x_mat, bias)                # (B, Cout, P) f32
    feat = feat_mat.reshape(B, Cout, Ho, Wo)                     # NCHW

    # Mask nearest-downsample == F.interpolate(m[None].float(), size=(Ho,Wo)).bool():
    # src index = floor(dst * in/out).  Pure memory-bound gather, done wrapper-side
    # (per perf review: not worth an MXU/selector kernel or per-batch grid overhead).
    row_idx = (jnp.arange(Ho) * H) // Ho
    col_idx = (jnp.arange(Wo) * W) // Wo
    m_out = mask[:, row_idx[:, None], col_idx[None, :]].astype(jnp.bool_)

    return {"0": (feat, m_out)}


if __name__ == "__main__":
    B, Cin, H, W = 2, 4, 16, 16
    Cout = 32          # num_channels
    stride = 4

    key = jax.random.PRNGKey(0)
    kw, kb, kx, km = jax.random.split(key, 4)
    params = {
        "w": jax.random.normal(kw, (Cin, Cout), jnp.float32) * 0.1,
        "b": jax.random.normal(kb, (1, Cout), jnp.float32) * 0.1,
    }
    x = jax.random.normal(kx, (B, Cin, H, W), jnp.float32)
    mask = jax.random.uniform(km, (B, H, W)) > 0.3

    out = backbone_base_forward(x, mask, params, stride=stride)
    feat, m_out = out["0"]
    jax.block_until_ready(feat)
    jax.block_until_ready(m_out)

    # Reference (pure JAX) with bf16-rounded MXU inputs, f32 accumulation.
    Ho, Wo = H // stride, W // stride
    x_s = x[:, :, ::stride, ::stride]
    x_bf = x_s.astype(jnp.bfloat16).astype(jnp.float32)
    w_bf = params["w"].astype(jnp.bfloat16).astype(jnp.float32)
    ref_feat = jnp.maximum(
        jnp.einsum("bchw,cd->bdhw", x_bf, w_bf)
        + params["b"][0][None, :, None, None],
        0.0,
    )
    ri = (jnp.arange(Ho) * H) // Ho
    ci = (jnp.arange(Wo) * W) // Wo
    ref_mask = mask[:, ri][:, :, ci]

    assert feat.shape == (B, Cout, Ho, Wo)
    assert m_out.shape == (B, Ho, Wo) and m_out.dtype == jnp.bool_
    assert jnp.allclose(feat, ref_feat, atol=1e-4, rtol=1e-4)
    assert jnp.array_equal(m_out, ref_mask)

    print("KERNEL_OK")
</pallas_src>

<mosaic_0001>
module attributes {stable_mosaic.version = 11 : i64} {
  func.func @conv1x1_bias_relu_kernel(%arg0: i32, %arg1: i32, %arg2: i32, %arg3: i32, %arg4: memref<32x4xbf16, #tpu.memory_space<vmem>>, %arg5: memref<1x4x128xbf16, #tpu.memory_space<vmem>>, %arg6: memref<32x1xf32, #tpu.memory_space<vmem>>, %arg7: memref<1x32x128xf32, #tpu.memory_space<vmem>>, %arg8: memref<32x128xf32, #tpu.memory_space<vmem>>) attributes {dimension_semantics = [#tpu.dimension_semantics<parallel>, #tpu.dimension_semantics<parallel>, #tpu.dimension_semantics<parallel>, #tpu.dimension_semantics<arbitrary>], iteration_bounds = array<i64: 2, 1, 1, 1>, scalar_prefetch = 0 : i64, scratch_operands = 1 : i64, tpu.core_type = #tpu.core_type<tc>, window_params = [{transform_indices = @transform_0, window_bounds = array<i64: 32, 4>}, {transform_indices = @transform_1, window_bounds = array<i64: 1, 4, 128>}, {transform_indices = @transform_2, window_bounds = array<i64: 32, 1>}, {transform_indices = @transform_3, window_bounds = array<i64: 1, 32, 128>}]} {
    %c0_i32 = arith.constant 0 : i32
    %0 = arith.cmpi eq, %arg3, %c0_i32 : i32
    %1 = arith.extui %0 : i1 to i32
    %c0_i32_0 = arith.constant 0 : i32
    %2 = arith.cmpi ne, %1, %c0_i32_0 : i32
    scf.if %2 {
      %cst_11 = arith.constant 0.000000e+00 : f32
      %13 = vector.broadcast %cst_11 : f32 to vector<32x128xf32>
      %c0_12 = arith.constant 0 : index
      %c0_13 = arith.constant 0 : index
      %14 = vector.load %arg8[%c0_12, %c0_13] : memref<32x128xf32, #tpu.memory_space<vmem>>, vector<32x128xf32>
      tpu.vector_store %arg8[%c0_12, %c0_13], %13 {strides = array<i32>} : memref<32x128xf32, #tpu.memory_space<vmem>>, vector<32x128xf32>,
    } else {
    }
    %c0 = arith.constant 0 : index
    %c0_1 = arith.constant 0 : index
    %3 = vector.load %arg8[%c0, %c0_1] : memref<32x128xf32, #tpu.memory_space<vmem>>, vector<32x128xf32>
    %c0_2 = arith.constant 0 : index
    %c0_3 = arith.constant 0 : index
    %4 = vector.load %arg4[%c0_2, %c0_3] : memref<32x4xbf16, #tpu.memory_space<vmem>>, vector<32x4xbf16>
    %c0_4 = arith.constant 0 : index
    %c0_5 = arith.constant 0 : index
    %c0_6 = arith.constant 0 : index
    %5 = vector.load %arg5[%c0_4, %c0_5, %c0_6] : memref<1x4x128xbf16, #tpu.memory_space<vmem>>, vector<1x4x128xbf16>
    %6 = vector.shape_cast %5 : vector<1x4x128xbf16> to vector<4x128xbf16>
    %cst = arith.constant dense<0.000000e+00> : vector<32x128xf32>
    %7 = tpu.matmul %4, %6, %cst {dimension_numbers = #tpu.dot_dimension_numbers<[1], [0], [0], [1], [0, 0, 1, 1], [], []>} : vector<32x4xbf16>, vector<4x128xbf16>, vector<32x128xf32> -> vector<32x128xf32>
    %8 = arith.addf %3, %7 : vector<32x128xf32>
    %c0_7 = arith.constant 0 : index
    %c0_8 = arith.constant 0 : index
    %9 = vector.load %arg8[%c0_7, %c0_8] : memref<32x128xf32, #tpu.memory_space<vmem>>, vector<32x128xf32>
    tpu.vector_store %arg8[%c0_7, %c0_8], %8 {strides = array<i32>} : memref<32x128xf32, #tpu.memory_space<vmem>>, vector<32x128xf32>,
    %c0_i32_9 = arith.constant 0 : i32
    %10 = arith.cmpi eq, %arg3, %c0_i32_9 : i32
    %11 = arith.extui %10 : i1 to i32
    %c0_i32_10 = arith.constant 0 : i32
    %12 = arith.cmpi ne, %11, %c0_i32_10 : i32
    scf.if %12 {
      %c0_11 = arith.constant 0 : index
      %c0_12 = arith.constant 0 : index
      %13 = vector.load %arg8[%c0_11, %c0_12] : memref<32x128xf32, #tpu.memory_space<vmem>>, vector<32x128xf32>
      %c0_13 = arith.constant 0 : index
      %c0_14 = arith.constant 0 : index
      %14 = vector.load %arg6[%c0_13, %c0_14] : memref<32x1xf32, #tpu.memory_space<vmem>>, vector<32x1xf32>
      %15 = vector.broadcast %14 : vector<32x1xf32> to vector<32x128xf32>
      %16 = arith.addf %13, %15 : vector<32x128xf32>
      %cst_15 = arith.constant 0.000000e+00 : f32
      %17 = vector.broadcast %cst_15 : f32 to vector<32x128xf32>
      %18 = arith.maximumf %16, %17 : vector<32x128xf32>
      %c0_16 = arith.constant 0 : index
      %c0_17 = arith.constant 0 : index
      %c0_18 = arith.constant 0 : index
      %19 = vector.load %arg7[%c0_16, %c0_17, %c0_18] : memref<1x32x128xf32, #tpu.memory_space<vmem>>, vector<1x32x128xf32>
      %20 = vector.shape_cast %19 : vector<1x32x128xf32> to vector<32x128xf32>
      %21 = vector.shape_cast %18 : vector<32x128xf32> to vector<1x32x128xf32>
      tpu.vector_store %arg7[%c0_16, %c0_17, %c0_18], %21 {strides = array<i32>} : memref<1x32x128xf32, #tpu.memory_space<vmem>>, vector<1x32x128xf32>,
    } else {
    }
    return
  }
  func.func @transform_0(%arg0: i32, %arg1: i32, %arg2: i32, %arg3: i32) -> (i32, i32) {
    %c0_i32 = arith.constant 0 : i32
    return %arg1, %arg3 : i32, i32
  }
  func.func @transform_1(%arg0: i32, %arg1: i32, %arg2: i32, %arg3: i32) -> (i32, i32, i32) {
    %c0_i32 = arith.constant 0 : i32
    return %arg0, %arg3, %arg2 : i32, i32, i32
  }
  func.func @transform_2(%arg0: i32, %arg1: i32, %arg2: i32, %arg3: i32) -> (i32, i32) {
    %c0_i32 = arith.constant 0 : i32
    %c0_i32_0 = arith.constant 0 : i32
    return %arg1, %c0_i32 : i32, i32
  }
  func.func @transform_3(%arg0: i32, %arg1: i32, %arg2: i32, %arg3: i32) -> (i32, i32, i32) {
    %c0_i32 = arith.constant 0 : i32
    return %arg0, %arg1, %arg2 : i32, i32, i32
  }
}

</mosaic_0001>

<llo_original>
// kernel: tpu_custom_call.1
$region0: #{tpu_custom_call.1}
  #allocation0 [shape = 'u32[]', space=smem, size = 0x4, offset = 0x4, fixed_abs, tag = 'smem constant byte address 0x4 - core index']
  #allocation1 [shape = 'u32[144,128]{1,0:T(1,128)}', space=vmem, size = 0x12000, scoped, tag = 'internal scratch']
  #allocation2 [shape = 'f32[32,128]{1,0:T(8,128)}', space=vmem, size = 0x4000, scoped, tag = 'scratch operand']
  %s0 = inlined_call_operand.vmem [shape: bf16[32,4], index: 0, kind: input, shape index: {}]
  %s1 = inlined_call_operand.vmem [shape: bf16[2,4,128], index: 1, kind: input, shape index: {}]
  %s2 = inlined_call_operand.vmem [shape: f32[32,1], index: 2, kind: input, shape index: {}]
  %s3 = inlined_call_operand.hbm [shape: f32[2,32,128], index: 3, kind: output, shape index: {}]
  %s4 = sld [smem:[#allocation0]]
  $region53: #{tpu_custom_call.1} parent=0
    _
  %s6 = ssub.s32 1, %s4
  %s7 = scalar_select 0, %s6, %s4
  $region1: #{tpu_custom_call.1} parent=0
    #allocation3 [shape = 'u8[32768]{0}', space=vmem, size = 0x8000, scoped, tag = 'output window, operand 0']
    #allocation4 [shape = 's32[2]{0}', space=sflag, size = 0x8, scoped, tag = 'scoped memory for tpu_custom_call.1']
    %8 = vsyncpa [#allocation4], 0
    %s9 = scalar_lea.sflag [#allocation4], 1
    %10 = vsyncpa %s9, 0
    loop: start=0, step=1, limit=4
    $region2: #{tpu_custom_call.1} parent=1 // loop_pre_header
      _
    $region3: #{tpu_custom_call.1} parent=1 // loop_header
      %s12 = sphi 0, %s16
      %p13 = scmp.ge.s32.totalorder %s12, 4
      %s19 = sphi 0, %s45
      %s20 = sphi 0, %s41
      %s21 = sphi 0, %s37
      %s22 = sphi 0, %s33
      %s23 = sphi 0, %s19
      %s24 = sphi 0, %s20
      %s25 = sphi 0, %s21
      %s26 = sphi 0, %s22
      %s27 = sphi 0, %s23
      %s28 = sphi 0, %s24
      %s29 = sphi 0, %s25
      %s30 = sphi 0, %s26
      %s50 = sphi 0, %s52
      %s53 = sphi 0, %s50
      %s54 = sphi 0, %s53
      %s70 = sphi 0, %s54
      %s80 = sphi 0, %s82
      %s83 = sphi 0, %s80
      %s84 = sphi 0, %s83
      %s100 = sphi 0, %s84
      %s106 = sphi 0, %s108
      %s109 = sphi 0, %s106
      %s110 = sphi 0, %s109
      %s126 = sphi 0, %s110
      %s136 = sphi 0, %s138
      %s139 = sphi 0, %s136
      %s140 = sphi 0, %s139
      %s156 = sphi 0, %s140
    $region4: #{tpu_custom_call.1} parent=1 // loop_header_branch
      %15 = sbr.rel (%p13) target = $region8
    $region5: #{tpu_custom_call.1} parent=1 // loop_body
      %s17 = ssub.s32 %s12, 1
      %s18 = ssub.s32 %s12, 2
      %s31 = sadd.s32 1, %s22
      %p32 = scmp.ge.s32.totalorder %s31, 1
      %s33 = scalar_select %p32, 0, %s31
      %s34 = sadd.s32 1, %s21
      %s35 = scalar_select %p32, %s34, %s21
      %p36 = scmp.ge.s32.totalorder %s35, 1
      %s37 = scalar_select %p36, 0, %s35
      %s38 = sadd.s32 1, %s20
      %s39 = scalar_select %p36, %s38, %s20
      %p40 = scmp.ge.s32.totalorder %s39, 1
      %s41 = scalar_select %p40, 0, %s39
      %s42 = sadd.s32 1, %s19
      %s43 = scalar_select %p40, %s42, %s19
      %p44 = scmp.ge.s32.totalorder %s43, 2
      %s45 = scalar_select %p44, 0, %s43
      %s46 = ssub.s32 %s20, %s41
      %s47 = ssub.s32 %s22, %s33
      %s48 = sor.u32 %s46, %s47
      %p49 = scmp.eq.s32.totalorder %s48, 0
      %s51 = sadd.s32 %s50, 1
      %s52 = scalar_select %p49, %s50, %s51
      %p55 = pneg %p49
      %p56 = scmp.eq.s32.totalorder %s12, 1
      %p57 = por %p55, %p56
      %p58 = scmp.ne.s32.totalorder %s50, %s53
      %p59 = scmp.eq.s32.totalorder %s12, 0
      %p60 = por %p58, %p59
      %p61 = scmp.ne.s32.totalorder %s50, %s53
      %p62 = scmp.eq.s32.totalorder %s17, 1
      %p63 = por %p61, %p62
      %p64 = scmp.ne.s32.totalorder %s53, %s54
      %p65 = scmp.eq.s32.totalorder %s17, 0
      %p66 = por %p64, %p65
      %p67 = scmp.ne.s32.totalorder %s53, %s54
      %p68 = scmp.eq.s32.totalorder %s18, 1
      %p69 = por %p67, %p68
      %p71 = scmp.ne.s32.totalorder %s54, %s70
      %p72 = scmp.eq.s32.totalorder %s18, 0
      %p73 = por %p71, %p72
      %s74 = ssub.s32 %s19, %s45
      %s75 = ssub.s32 %s22, %s33
      %s76 = sor.u32 %s74, %s75
      %s77 = ssub.s32 %s21, %s37
      %s78 = sor.u32 %s76, %s77
      %p79 = scmp.eq.s32.totalorder %s78, 0
      %s81 = sadd.s32 %s80, 1
      %s82 = scalar_select %p79, %s80, %s81
      %p85 = pneg %p79
      %p86 = scmp.eq.s32.totalorder %s12, 1
      %p87 = por %p85, %p86
      %p88 = scmp.ne.s32.totalorder %s80, %s83
      %p89 = scmp.eq.s32.totalorder %s12, 0
      %p90 = por %p88, %p89
      %p91 = scmp.ne.s32.totalorder %s80, %s83
      %p92 = scmp.eq.s32.totalorder %s17, 1
      %p93 = por %p91, %p92
      %p94 = scmp.ne.s32.totalorder %s83, %s84
      %p95 = scmp.eq.s32.totalorder %s17, 0
      %p96 = por %p94, %p95
      %p97 = scmp.ne.s32.totalorder %s83, %s84
      %p98 = scmp.eq.s32.totalorder %s18, 1
      %p99 = por %p97, %p98
      %p101 = scmp.ne.s32.totalorder %s84, %s100
      %p102 = scmp.eq.s32.totalorder %s18, 0
      %p103 = por %p101, %p102
      %s104 = ssub.s32 %s20, %s41
      %p105 = scmp.eq.s32.totalorder %s104, 0
      %s107 = sadd.s32 %s106, 1
      %s108 = scalar_select %p105, %s106, %s107
      %p111 = pneg %p105
      %p112 = scmp.eq.s32.totalorder %s12, 1
      %p113 = por %p111, %p112
      %p114 = scmp.ne.s32.totalorder %s106, %s109
      %p115 = scmp.eq.s32.totalorder %s12, 0
      %p116 = por %p114, %p115
      %p117 = scmp.ne.s32.totalorder %s106, %s109
      %p118 = scmp.eq.s32.totalorder %s17, 1
      %p119 = por %p117, %p118
      %p120 = scmp.ne.s32.totalorder %s109, %s110
      %p121 = scmp.eq.s32.totalorder %s17, 0
      %p122 = por %p120, %p121
      %p123 = scmp.ne.s32.totalorder %s109, %s110
      %p124 = scmp.eq.s32.totalorder %s18, 1
      %p125 = por %p123, %p124
      %p127 = scmp.ne.s32.totalorder %s110, %s126
      %p128 = scmp.eq.s32.totalorder %s18, 0
      %p129 = por %p127, %p128
      %s130 = ssub.s32 %s19, %s45
      %s131 = ssub.s32 %s20, %s41
      %s132 = sor.u32 %s130, %s131
      %s133 = ssub.s32 %s21, %s37
      %s134 = sor.u32 %s132, %s133
      %p135 = scmp.eq.s32.totalorder %s134, 0
      %s137 = sadd.s32 %s136, 1
      %s138 = scalar_select %p135, %s136, %s137
      %p141 = pneg %p135
      %p142 = scmp.eq.s32.totalorder %s12, 1
      %p143 = por %p141, %p142
      %p144 = scmp.ne.s32.totalorder %s136, %s139
      %p145 = scmp.eq.s32.totalorder %s12, 0
      %p146 = por %p144, %p145
      %p147 = scmp.ne.s32.totalorder %s136, %s139
      %p148 = scmp.eq.s32.totalorder %s17, 1
      %p149 = por %p147, %p148
      %p150 = scmp.ne.s32.totalorder %s139, %s140
      %p151 = scmp.eq.s32.totalorder %s17, 0
      %p152 = por %p150, %p151
      %p153 = scmp.ne.s32.totalorder %s139, %s140
      %p154 = scmp.eq.s32.totalorder %s18, 1
      %p155 = por %p153, %p154
      %p157 = scmp.ne.s32.totalorder %s140, %s156
      %p158 = scmp.eq.s32.totalorder %s18, 0
      %p159 = por %p157, %p158
      %p160 = scmp.le.s32.totalorder 1, %s12
      %p161 = scmp.lt.s32.totalorder %s12, 3
      %p162 = pnand %p160, %p161
      %p163 = pneg %p162
      // Predicated region
      $region9: #{tpu_custom_call.1} parent=5 // pred_check
        _
      $region10: #{tpu_custom_call.1} parent=5 // pred_check_branch
        %165 = sbr.rel (%p162) target = $region12
      $region11: #{tpu_custom_call.1} parent=5 // pred_region
        %s166 = ssub.s32 %s12, 1
        // Predicated region
        $region13: #{tpu_custom_call.1} parent=11 // pred_check
          %p167 = pneg %p66
        $region14: #{tpu_custom_call.1} parent=11 // pred_check_branch
          %169 = sbr.rel (%p167) target = $region16
        $region15: #{tpu_custom_call.1} parent=11 // pred_region
          %s170 = smul.u32 4, %s24
          %p171 = scmp.lt.s32.totalorder %s170, 3
          %s172 = scalar_select %p171, %s170, 3
          %p173 = scmp.lt.s32.totalorder %s26, 0
          %s174 = scalar_select %p173, %s26, 0
          %s175 = sadd.s32 %s174, %s172
          %s176 = smul.addr %s175, 4
          %s177 = scalar_lea.vmem %s0, %s176
          %s178 = smul.u32 4, %s24
        $region16: #{tpu_custom_call.1} parent=11 // pred_fallthru
          _
        // Predicated region
        $region17: #{tpu_custom_call.1} parent=11 // pred_check
          %p179 = pneg %p122
        $region18: #{tpu_custom_call.1} parent=11 // pred_check_branch
          %181 = sbr.rel (%p179) target = $region20
        $region19: #{tpu_custom_call.1} parent=11 // pred_region
          %s182 = smul.u32 4, %s24
          %p183 = scmp.lt.s32.totalorder %s182, 3
          %s184 = scalar_select %p183, %s182, 3
          %s185 = smul.addr %s184, 8
          %s186 = scalar_lea.vmem %s2, %s185
          %s187 = smul.u32 4, %s24
        $region20: #{tpu_custom_call.1} parent=11 // pred_fallthru
          _
      $region12: #{tpu_custom_call.1} parent=5 // pred_fallthru
        _
      %p188 = scmp.lt.s32.totalorder %s12, 2
      // Predicated region
      $region21: #{tpu_custom_call.1} parent=5 // pred_check
        %p189 = pneg %p188
      $region22: #{tpu_custom_call.1} parent=5 // pred_check_branch
        %191 = sbr.rel (%p189) target = $region24
      $region23: #{tpu_custom_call.1} parent=5 // pred_region
        // Predicated region
        $region25: #{tpu_custom_call.1} parent=23 // pred_check
          %p192 = pneg %p90
        $region26: #{tpu_custom_call.1} parent=23 // pred_check_branch
          %194 = sbr.rel (%p192) target = $region28
        $region27: #{tpu_custom_call.1} parent=23 // pred_region
          %p195 = scmp.lt.s32.totalorder %s19, 1
          %s196 = scalar_select %p195, %s19, 1
          %p197 = scmp.lt.s32.totalorder %s22, 0
          %s198 = scalar_select %p197, %s22, 0
          %p199 = scmp.lt.s32.totalorder %s21, 0
          %s200 = scalar_select %p199, %s21, 0
          %s201 = sadd.s32 %s200, %s198
          %s202 = sadd.s32 %s201, %s196
          %s203 = smul.addr %s202, 2
          %s204 = scalar_lea.vmem %s1, %s203
        $region28: #{tpu_custom_call.1} parent=23 // pred_fallthru
          _
      $region24: #{tpu_custom_call.1} parent=5 // pred_fallthru
        _
      %p205 = scmp.le.s32.totalorder 1, %s12
      %p206 = scmp.lt.s32.totalorder %s12, 3
      %p207 = pnand %p205, %p206
      %p208 = pneg %p207
      // Predicated region
      $region29: #{tpu_custom_call.1} parent=5 // pred_check
        _
      $region30: #{tpu_custom_call.1} parent=5 // pred_check_branch
        %210 = sbr.rel (%p207) target = $region32
      $region31: #{tpu_custom_call.1} parent=5 // pred_region
        %s211 = ssub.s32 %s12, 1
        %s212 = smul.u32 4, %s24
        %p213 = scmp.lt.s32.totalorder %s212, 3
        %s214 = scalar_select %p213, %s212, 3
        %p215 = scmp.lt.s32.totalorder %s26, 0
        %s216 = scalar_select %p215, %s26, 0
        %s217 = sadd.s32 %s216, %s214
        %s218 = smul.addr %s217, 4
        %s219 = scalar_lea.vmem %s0, %s218
        %p220 = pneg %p66
        %p221 = pneg %p63
        %p222 = scmp.lt.s32.totalorder %s23, 1
        %s223 = scalar_select %p222, %s23, 1
        %p224 = scmp.lt.s32.totalorder %s26, 0
        %s225 = scalar_select %p224, %s26, 0
        %p226 = scmp.lt.s32.totalorder %s25, 0
        %s227 = scalar_select %p226, %s25, 0
        %s228 = sadd.s32 %s227, %s225
        %s229 = sadd.s32 %s228, %s223
        %s230 = smul.addr %s229, 2
        %s231 = scalar_lea.vmem %s1, %s230
        %p232 = pneg %p96
        %p233 = pneg %p93
        %s234 = smul.u32 4, %s24
        %p235 = scmp.lt.s32.totalorder %s234, 3
        %s236 = scalar_select %p235, %s234, 3
        %s237 = smul.addr %s236, 8
        %s238 = scalar_lea.vmem %s2, %s237
        %p239 = pneg %p122
        %p240 = pneg %p119
        %p241 = pneg %p152
        %p242 = pneg %p149
        %s243 = sand.u32 %s139, 1
        %s244 = scalar_lea.sflag [#allocation4], %s243
        %s245 = sand.u32 %s139, 1
        %s246 = smul.addr %s245, 32
        %s247 = scalar_lea.vmem [#allocation3], %s246
        %s248 = smul.u32 4, %s24
        %p249 = scmp.lt.s32.totalorder %s248, 3
        %s250 = scalar_select %p249, %s248, 3
        %p251 = scmp.lt.s32.totalorder %s26, 0
        %s252 = scalar_select %p251, %s26, 0
        %s253 = sadd.s32 %s252, %s250
        %s254 = smul.addr %s253, 4
        %s255 = scalar_lea.vmem %s0, %s254
        %s256 = smul.u32 4, %s24
        %p257 = scmp.lt.s32.totalorder %s23, 1
        %s258 = scalar_select %p257, %s23, 1
        %p259 = scmp.lt.s32.totalorder %s26, 0
        %s260 = scalar_select %p259, %s26, 0
        %p261 = scmp.lt.s32.totalorder %s25, 0
        %s262 = scalar_select %p261, %s25, 0
        %s263 = sadd.s32 %s262, %s260
        %s264 = sadd.s32 %s263, %s258
        %s265 = smul.addr %s264, 2
        %s266 = scalar_lea.vmem %s1, %s265
        %s267 = smul.u32 4, %s24
        %p268 = scmp.lt.s32.totalorder %s267, 3
        %s269 = scalar_select %p268, %s267, 3
        %s270 = smul.addr %s269, 8
        %s271 = scalar_lea.vmem %s2, %s270
        %s272 = smul.u32 4, %s24
        %s273 = smul.u32 4, %s24
        %p275 = scmp.eq.s32.totalorder %s26, 0
        // Predicated region
        $region33: #{tpu_custom_call.1} parent=31 // pred_check
          %p276 = pneg %p275
        $region34: #{tpu_custom_call.1} parent=31 // pred_check_branch
          %278 = sbr.rel (%p276) target = $region36
        $region35: #{tpu_custom_call.1} parent=31 // pred_region
          %279 = vst [vmem:[#allocation2] sm:$0xff] 0.0
          %280 = vst [vmem:[#allocation2 + $0x8] sm:$0xff] 0.0
          %281 = vst [vmem:[#allocation2 + $0x10] sm:$0xff] 0.0
          %282 = vst [vmem:[#allocation2 + $0x18] sm:$0xff] 0.0
        $region36: #{tpu_custom_call.1} parent=31 // pred_fallthru
          _
        %v283 = vld [vmem:[#allocation2] sm:$0xff]
        %v284 = vld [vmem:[#allocation2 + $0x8] sm:$0xff]
        %v285 = vld [vmem:[#allocation2 + $0x10] sm:$0xff]
        %v286 = vld [vmem:[#allocation2 + $0x18] sm:$0xff]
        %v287 = vld [vmem:[%s255] sm:$0xf]
        %v288 = vld [vmem:[%s255 + $0x4] sm:$0xf]
        %v289 = vld [vmem:[%s255 + $0x8] sm:$0xf]
        %v290 = vld [vmem:[%s255 + $0xc] sm:$0xf]
        %v291 = vld [vmem:[%s266] sm:$0x3]
        %v296 = vunpack.c.l.b16 %v287
        %v297 = vunpack.c.l.b16 %v288
        %v298 = vunpack.c.l.b16 %v289
        %v299 = vunpack.c.l.b16 %v290
        %v300 = vpack.c.b16 %v297, %v296
        %v301 = vpack.c.b16 %v299, %v298
        %vm302 = vcmask 31744
        %v304 = vsel %vm302, %v300, 0
        %v307 = vsel %vm302, %v301, 0
        %vm309 = vcmask 1041408
        %v311 = vsel %vm309, %v291, 0
        %313 = vmatprep.subr.bf16.mxu0 0
        %314 = vmatpush1.bf16.msra.mxu0 0
        %315 = vmatprep.subr.bf16.mxu0 0
        %316 = vmatpush1.bf16.msra.mxu0 0
        %317 = vmatprep.subr.bf16.mxu0 0
        %318 = vmatpush1.bf16.msra.mxu0 0
        %319 = vmatprep.subr.bf16.mxu0 0
        %320 = vmatpush1.bf16.msra.mxu0 0
        %321 = vmatprep.subr.bf16.mxu0 0
        %322 = vmatpush1.bf16.msra.mxu0 0
        %323 = vmatprep.subr.bf16.mxu0 0
        %324 = vmatpush1.bf16.msra.mxu0 0
        %325 = vmatprep.subr.bf16.mxu0 0
        %326 = vmatpush1.bf16.msra.mxu0 0
        %327 = vmatprep.subr.bf16.mxu0 0
        %328 = vmatpush1.bf16.msra.mxu0 %v311
        %329 = vmatprep.subr.bf16.mxu0 0
        %330 = vmatpush2.bf16.msra.mxu0 0
        %331 = vmatprep.subr.bf16.mxu0 0
        %332 = vmatpush2.bf16.msra.mxu0 0
        %333 = vmatprep.subr.bf16.mxu0 0
        %334 = vmatpush2.bf16.msra.mxu0 0
        %335 = vmatprep.subr.bf16.mxu0 0
        %336 = vmatpush2.bf16.msra.mxu0 0
        %337 = vmatprep.subr.bf16.mxu0 0
        %338 = vmatpush2.bf16.msra.mxu0 0
        %339 = vmatprep.subr.bf16.mxu0 0
        %340 = vmatpush2.bf16.msra.mxu0 0
        %341 = vmatprep.subr.bf16.mxu0 0
        %342 = vmatpush2.bf16.msra.mxu0 0
        %343 = vmatprep.subr.bf16.mxu0 0
        %344 = vmatpush2.bf16.msra.mxu0 0
        %345 = vmatprep.mubr.bf16.mxu0 0
        %346 = vmatmul.mubr.bf16.gmra.mxu0 %v304
        %v347 = vpop.f32.mrf.mxu0
        %v348 = vadd.f32 0.0, %v347
        %v349 = vpop.f32.mrf.mxu0
        %v350 = vpop.f32.mrf.mxu0
        %v351 = vadd.f32 0.0, %v350
        %v352 = vpop.f32.mrf.mxu0
        %353 = vmatprep.mubr.bf16.mxu0 0
        %354 = vmatmul.mubr.bf16.gmra.mxu0 %v307
        %v355 = vpop.f32.mrf.mxu0
        %v356 = vadd.f32 0.0, %v355
        %v357 = vpop.f32.mrf.mxu0
        %v358 = vpop.f32.mrf.mxu0
        %v359 = vadd.f32 0.0, %v358
        %v360 = vpop.f32.mrf.mxu0
        %361 = vdwg.mxu0
        %v362 = vadd.f32 %v283, %v348
        %v363 = vadd.f32 %v284, %v351
        %v364 = vadd.f32 %v285, %v356
        %v365 = vadd.f32 %v286, %v359
        %366 = vst [vmem:[#allocation2] sm:$0xff] %v362
        %367 = vst [vmem:[#allocation2 + $0x8] sm:$0xff] %v363
        %368 = vst [vmem:[#allocation2 + $0x10] sm:$0xff] %v364
        %369 = vst [vmem:[#allocation2 + $0x18] sm:$0xff] %v365
        // Predicated region
        $region37: #{tpu_custom_call.1} parent=31 // pred_check
          %p370 = pneg %p275
        $region38: #{tpu_custom_call.1} parent=31 // pred_check_branch
          %372 = sbr.rel (%p370) target = $region40
        $region39: #{tpu_custom_call.1} parent=31 // pred_region
          %v373 = vld [vmem:[#allocation2] sm:$0xff]
          %v374 = vld [vmem:[#allocation2 + $0x8] sm:$0xff]
          %v375 = vld [vmem:[#allocation2 + $0x10] sm:$0xff]
          %v376 = vld [vmem:[#allocation2 + $0x18] sm:$0xff]
          %v377 = vld [vmem:[%s271] sm:$0xff]
          %v378 = vld [vmem:[%s271 + $0x8] sm:$0xff]
          %v379 = vld [vmem:[%s271 + $0x10] sm:$0xff]
          %v380 = vld [vmem:[%s271 + $0x18] sm:$0xff]
          %382 = vset.pattern.permute.xlu0 0
          %383 = vperm.xlu0 %382, %v377
          %v384 = vpop.permute.xlu0 %383
          %387 = vset.pattern.permute.xlu0 0
          %388 = vperm.xlu0 %387, %v378
          %v389 = vpop.permute.xlu0 %388
          %392 = vset.pattern.permute.xlu0 0
          %393 = vperm.xlu0 %392, %v379
          %v394 = vpop.permute.xlu0 %393
          %397 = vset.pattern.permute.xlu0 0
          %398 = vperm.xlu0 %397, %v380
          %v399 = vpop.permute.xlu0 %398
          %v401 = vadd.f32 %v373, %v384
          %v402 = vadd.f32 %v374, %v389
          %v403 = vadd.f32 %v375, %v394
          %v404 = vadd.f32 %v376, %v399
          %v405 = vmax.f32 %v401, 0.0
          %v406 = vmax.f32 %v402, 0.0
          %v407 = vmax.f32 %v403, 0.0
          %v408 = vmax.f32 %v404, 0.0
          %409 = vst [vmem:[%s247] sm:$0xff] %v405
          %410 = vst [vmem:[%s247 + $0x8] sm:$0xff] %v406
          %411 = vst [vmem:[%s247 + $0x10] sm:$0xff] %v407
          %412 = vst [vmem:[%s247 + $0x18] sm:$0xff] %v408
        $region40: #{tpu_custom_call.1} parent=31 // pred_fallthru
          _
        %s413 = sand.u32 %s139, 1
        %s414 = scalar_lea.sflag [#allocation4], %s413
        %s415 = sand.u32 %s139, 1
        %s416 = smul.addr %s415, 32
        %s417 = scalar_lea.vmem [#allocation3], %s416
        // Predicated region
        $region41: #{tpu_custom_call.1} parent=31 // pred_check
          %p418 = pneg %p149
        $region42: #{tpu_custom_call.1} parent=31 // pred_check_branch
          %420 = sbr.rel (%p418) target = $region44
        $region43: #{tpu_custom_call.1} parent=31 // pred_region
          %s421 = smul.u32 4, %s24
          %s423 = ssub.s32 512, 512
          %424 = vsyncadd %s414, %s423
          %s425 = sadd.s32 %s25, %s421
          %s426 = smul.addr %s23, 4
          %s427 = sadd.s32 %s425, %s426
          %s428 = smul.addr %s427, 128
          %s429 = scalar_lea.hbm %s3, %s428
          %s430 = sshll.u32 %s417, 4
          %s431 = int_to_ptr.vmem [resolvable:$true] %s430
          %436 = dma.vmem_to_hbm [thread:$0]  %s431, 512, %s429, %s414, 128, 128, 8
        $region44: #{tpu_custom_call.1} parent=31 // pred_fallthru
          _
      $region32: #{tpu_custom_call.1} parent=5 // pred_fallthru
        _
      %p437 = scmp.le.s32.totalorder 2, %s12
      // Predicated region
      $region45: #{tpu_custom_call.1} parent=5 // pred_check
        %p438 = pneg %p437
      $region46: #{tpu_custom_call.1} parent=5 // pred_check_branch
        %440 = sbr.rel (%p438) target = $region48
      $region47: #{tpu_custom_call.1} parent=5 // pred_region
        %s441 = ssub.s32 %s12, 2
        // Predicated region
        $region49: #{tpu_custom_call.1} parent=47 // pred_check
          %p442 = pneg %p155
        $region50: #{tpu_custom_call.1} parent=47 // pred_check_branch
          %444 = sbr.rel (%p442) target = $region52
        $region51: #{tpu_custom_call.1} parent=47 // pred_region
          %s445 = sand.u32 %s140, 1
          %s446 = scalar_lea.sflag [#allocation4], %s445
          %s447 = sand.u32 %s140, 1
          %s448 = smul.addr %s447, 32
          %s449 = scalar_lea.vmem [#allocation3], %s448
          %450 = dma.done %s446, 512
        $region52: #{tpu_custom_call.1} parent=47 // pred_fallthru
          _
      $region48: #{tpu_custom_call.1} parent=5 // pred_fallthru
        _
    $region6: #{tpu_custom_call.1} parent=1 // loop_footer
      %s16 = sadd.s32 1, %s12
    $region7: #{tpu_custom_call.1} parent=1 // loop_footer_branch
      %11 = sbr.rel target = $region3
    $region8: #{tpu_custom_call.1} parent=1 // loop_exit
      _
    %451 = vsyncpa [#allocation4], 1
    %s452 = scalar_lea.sflag [#allocation4], 1
    %453 = vsyncpa %s452, 1

</llo_original>
